<compile_context>
chip_gen: v5e
topology: v5e:2x2
jax: 0.10.0
libtpu: 0.0.40
codegen_flags: <defaults>
</compile_context>

<pallas_src>
import functools

import jax
import jax.numpy as jnp
from jax.experimental import pallas as pl
from jax.experimental.pallas import tpu as pltpu

_EPS = 1e-5


# ----------------------------- Pallas kernels ------------------------------ #

def _row_stats_kernel(x_ref, sum_ref, sq_ref):
    # Per-row (lane) reductions: sum and sum of squares over H*W.
    x = x_ref[...]
    sum_ref[...] = jnp.sum(x, axis=-1, keepdims=True)
    sq_ref[...] = jnp.sum(x * x, axis=-1, keepdims=True)


def _apply_kernel(x_ref, p_ref, o_ref):
    # p holds the fused per-row [scale, offset]; single FMA per element.
    p = p_ref[...]                     # (rows, 2)
    scale = p[:, 0:1]
    offset = p[:, 1:2]
    o_ref[...] = x_ref[...] * scale + offset


# ------------------------------- wrapper ----------------------------------- #

def _pick_block_rows(total_rows, hw, target_bytes):
    """Rows per block: multiple of 8 (or full extent), ~target_bytes of f32 data."""
    tr = max(1, target_bytes // (hw * 4))
    if tr >= total_rows:
        return total_rows              # single full-extent block (always legal)
    return max(8, (tr // 8) * 8)


@functools.partial(jax.jit, static_argnames=("block_target_bytes",))
def ibn_forward(x, gamma_in, beta_in, gamma_bn, beta_bn,
                *, block_target_bytes=2 * 1024 * 1024):
    """x: (N, C, H, W) float32 NCHW.  Returns (N, C, H, W)."""
    N, C, H, W = x.shape
    half = C // 2
    HW = H * W
    R = N * C

    x2d = x.reshape(R, HW)                       # free reshape, row = (n, c)
    tr = _pick_block_rows(R, HW, block_target_bytes)
    grid = (pl.cdiv(R, tr),)
    params_cp = pltpu.CompilerParams(dimension_semantics=("parallel",))

    # ---- pass 1: per-row sum / sum-of-squares ----
    row_sum, row_sq = pl.pallas_call(
        _row_stats_kernel,
        out_shape=(
            jax.ShapeDtypeStruct((R, 1), jnp.float32),
            jax.ShapeDtypeStruct((R, 1), jnp.float32),
        ),
        grid=grid,
        in_specs=[pl.BlockSpec((tr, HW), lambda i: (i, 0))],
        out_specs=(
            pl.BlockSpec((tr, 1), lambda i: (i, 0)),
            pl.BlockSpec((tr, 1), lambda i: (i, 0)),
        ),
        compiler_params=params_cp,
    )(x2d)

    # ---- tiny (N, C) glue: fold stats + affine into per-row scale/offset ----
    row_sum = row_sum.reshape(N, C)
    row_sq = row_sq.reshape(N, C)

    # Instance-norm half: per-(n, c) stats over H*W (biased variance).
    mu_in = row_sum[:, :half] / HW
    var_in = row_sq[:, :half] / HW - mu_in * mu_in
    scale_in = gamma_in[None, :] * jax.lax.rsqrt(var_in + _EPS)
    offset_in = beta_in[None, :] - mu_in * scale_in

    # Batch-norm half: per-channel batch stats over N*H*W (training mode).
    cnt = N * HW
    mu_bn = jnp.sum(row_sum[:, half:], axis=0) / cnt
    var_bn = jnp.sum(row_sq[:, half:], axis=0) / cnt - mu_bn * mu_bn
    scale_bn_c = gamma_bn * jax.lax.rsqrt(var_bn + _EPS)
    offset_bn_c = beta_bn - mu_bn * scale_bn_c
    scale_bn = jnp.broadcast_to(scale_bn_c[None, :], (N, C - half))
    offset_bn = jnp.broadcast_to(offset_bn_c[None, :], (N, C - half))

    scale = jnp.concatenate([scale_in, scale_bn], axis=1).reshape(R, 1)
    offset = jnp.concatenate([offset_in, offset_bn], axis=1).reshape(R, 1)
    params = jnp.concatenate([scale, offset], axis=1)            # (R, 2)

    # ---- pass 2: fused normalize + affine, written straight to the output ----
    out2d = pl.pallas_call(
        _apply_kernel,
        out_shape=jax.ShapeDtypeStruct((R, HW), jnp.float32),
        grid=grid,
        in_specs=[
            pl.BlockSpec((tr, HW), lambda i: (i, 0)),
            pl.BlockSpec((tr, 2), lambda i: (i, 0)),
        ],
        out_specs=pl.BlockSpec((tr, HW), lambda i: (i, 0)),
        compiler_params=params_cp,
    )(x2d, params)

    return out2d.reshape(N, C, H, W)


# ------------------------------- reference --------------------------------- #

def _reference(x, gamma_in, beta_in, gamma_bn, beta_bn):
    N, C, H, W = x.shape
    half = C // 2
    x1, x2 = x[:, :half], x[:, half:]
    mu1 = x1.mean(axis=(2, 3), keepdims=True)
    v1 = ((x1 - mu1) ** 2).mean(axis=(2, 3), keepdims=True)
    o1 = (x1 - mu1) / jnp.sqrt(v1 + _EPS) * gamma_in[None, :, None, None] \
        + beta_in[None, :, None, None]
    mu2 = x2.mean(axis=(0, 2, 3), keepdims=True)
    v2 = ((x2 - mu2) ** 2).mean(axis=(0, 2, 3), keepdims=True)
    o2 = (x2 - mu2) / jnp.sqrt(v2 + _EPS) * gamma_bn[None, :, None, None] \
        + beta_bn[None, :, None, None]
    return jnp.concatenate((o1, o2), axis=1)


def _make_inputs(key, N, C, H, W):
    half = C // 2
    c2 = C - half
    kx, kg1, kb1, kg2, kb2 = jax.random.split(key, 5)
    x = jax.random.normal(kx, (N, C, H, W), dtype=jnp.float32)
    gamma_in = 1.0 + 0.1 * jax.random.normal(kg1, (half,), dtype=jnp.float32)
    beta_in = 0.1 * jax.random.normal(kb1, (half,), dtype=jnp.float32)
    gamma_bn = 1.0 + 0.1 * jax.random.normal(kg2, (c2,), dtype=jnp.float32)
    beta_bn = 0.1 * jax.random.normal(kb2, (c2,), dtype=jnp.float32)
    return x, gamma_in, beta_in, gamma_bn, beta_bn


if __name__ == "__main__":
    key = jax.random.PRNGKey(0)

    # Case 1: small shape consistent with the module (planes=4 -> half=2).
    k1, k2 = jax.random.split(key)
    args1 = _make_inputs(k1, 2, 4, 16, 16)
    out1 = jax.block_until_ready(ibn_forward(*args1))
    ref1 = _reference(*args1)
    assert out1.shape == (2, 4, 16, 16)
    assert jnp.max(jnp.abs(out1 - ref1)) < 1e-4, "mismatch vs reference (case 1)"

    # Case 2: exercise a multi-block grid with a partial last row block
    # (planes=6, tiny block target forces grid > 1).
    args2 = _make_inputs(k2, 2, 6, 16, 16)
    out2 = jax.block_until_ready(
        ibn_forward(*args2, block_target_bytes=8192))
    ref2 = _reference(*args2)
    assert out2.shape == (2, 6, 16, 16)
    assert jnp.max(jnp.abs(out2 - ref2)) < 1e-4, "mismatch vs reference (case 2)"

    print("KERNEL_OK")
</pallas_src>

<mosaic_0001>
module attributes {stable_mosaic.version = 11 : i64} {
  func.func @_row_stats_kernel(%arg0: i32, %arg1: memref<8x256xf32, #tpu.memory_space<vmem>>, %arg2: memref<8x1xf32, #tpu.memory_space<vmem>>, %arg3: memref<8x1xf32, #tpu.memory_space<vmem>>) attributes {dimension_semantics = [#tpu.dimension_semantics<parallel>], iteration_bounds = array<i64: 1>, scalar_prefetch = 0 : i64, scratch_operands = 0 : i64, tpu.core_type = #tpu.core_type<tc>, window_params = [{transform_indices = @transform_0, window_bounds = array<i64: 8, 256>}, {transform_indices = @transform_1, window_bounds = array<i64: 8, 1>}, {transform_indices = @transform_2, window_bounds = array<i64: 8, 1>}]} {
    %c0 = arith.constant 0 : index
    %c0_0 = arith.constant 0 : index
    %0 = vector.load %arg1[%c0, %c0_0] : memref<8x256xf32, #tpu.memory_space<vmem>>, vector<8x256xf32>
    %cst = arith.constant dense<0.000000e+00> : vector<8xf32>
    %1 = vector.multi_reduction <add>, %0, %cst [1] : vector<8x256xf32> to vector<8xf32>
    %2 = vector.shape_cast %1 : vector<8xf32> to vector<8x1xf32>
    %c0_1 = arith.constant 0 : index
    %c0_2 = arith.constant 0 : index
    %3 = vector.load %arg2[%c0_1, %c0_2] : memref<8x1xf32, #tpu.memory_space<vmem>>, vector<8x1xf32>
    tpu.vector_store %arg2[%c0_1, %c0_2], %2 {strides = array<i32>} : memref<8x1xf32, #tpu.memory_space<vmem>>, vector<8x1xf32>,
    %4 = arith.mulf %0, %0 : vector<8x256xf32>
    %cst_3 = arith.constant dense<0.000000e+00> : vector<8xf32>
    %5 = vector.multi_reduction <add>, %4, %cst_3 [1] : vector<8x256xf32> to vector<8xf32>
    %6 = vector.shape_cast %5 : vector<8xf32> to vector<8x1xf32>
    %c0_4 = arith.constant 0 : index
    %c0_5 = arith.constant 0 : index
    %7 = vector.load %arg3[%c0_4, %c0_5] : memref<8x1xf32, #tpu.memory_space<vmem>>, vector<8x1xf32>
    tpu.vector_store %arg3[%c0_4, %c0_5], %6 {strides = array<i32>} : memref<8x1xf32, #tpu.memory_space<vmem>>, vector<8x1xf32>,
    return
  }
  func.func @transform_0(%arg0: i32) -> (i32, i32) {
    %c0_i32 = arith.constant 0 : i32
    %c0_i32_0 = arith.constant 0 : i32
    return %arg0, %c0_i32 : i32, i32
  }
  func.func @transform_1(%arg0: i32) -> (i32, i32) {
    %c0_i32 = arith.constant 0 : i32
    %c0_i32_0 = arith.constant 0 : i32
    return %arg0, %c0_i32 : i32, i32
  }
  func.func @transform_2(%arg0: i32) -> (i32, i32) {
    %c0_i32 = arith.constant 0 : i32
    %c0_i32_0 = arith.constant 0 : i32
    return %arg0, %c0_i32 : i32, i32
  }
}

module attributes {stable_mosaic.version = 11 : i64} {
  func.func @_apply_kernel(%arg0: i32, %arg1: memref<8x256xf32, #tpu.memory_space<vmem>>, %arg2: memref<8x2xf32, #tpu.memory_space<vmem>>, %arg3: memref<8x256xf32, #tpu.memory_space<vmem>>) attributes {dimension_semantics = [#tpu.dimension_semantics<parallel>], iteration_bounds = array<i64: 1>, scalar_prefetch = 0 : i64, scratch_operands = 0 : i64, tpu.core_type = #tpu.core_type<tc>, window_params = [{transform_indices = @transform_0, window_bounds = array<i64: 8, 256>}, {transform_indices = @transform_1, window_bounds = array<i64: 8, 2>}, {transform_indices = @transform_2, window_bounds = array<i64: 8, 256>}]} {
    %c0 = arith.constant 0 : index
    %c0_0 = arith.constant 0 : index
    %0 = vector.load %arg2[%c0, %c0_0] : memref<8x2xf32, #tpu.memory_space<vmem>>, vector<8x2xf32>
    %1 = vector.extract_strided_slice %0 {offsets = [0, 0], sizes = [8, 1], strides = [1, 1]} : vector<8x2xf32> to vector<8x1xf32>
    %2 = vector.extract_strided_slice %0 {offsets = [0, 1], sizes = [8, 1], strides = [1, 1]} : vector<8x2xf32> to vector<8x1xf32>
    %c0_1 = arith.constant 0 : index
    %c0_2 = arith.constant 0 : index
    %3 = vector.load %arg1[%c0_1, %c0_2] : memref<8x256xf32, #tpu.memory_space<vmem>>, vector<8x256xf32>
    %4 = vector.broadcast %1 : vector<8x1xf32> to vector<8x256xf32>
    %5 = arith.mulf %3, %4 : vector<8x256xf32>
    %6 = vector.broadcast %2 : vector<8x1xf32> to vector<8x256xf32>
    %7 = arith.addf %5, %6 : vector<8x256xf32>
    %c0_3 = arith.constant 0 : index
    %c0_4 = arith.constant 0 : index
    %8 = vector.load %arg3[%c0_3, %c0_4] : memref<8x256xf32, #tpu.memory_space<vmem>>, vector<8x256xf32>
    tpu.vector_store %arg3[%c0_3, %c0_4], %7 {strides = array<i32>} : memref<8x256xf32, #tpu.memory_space<vmem>>, vector<8x256xf32>,
    return
  }
  func.func @transform_0(%arg0: i32) -> (i32, i32) {
    %c0_i32 = arith.constant 0 : i32
    %c0_i32_0 = arith.constant 0 : i32
    return %arg0, %c0_i32 : i32, i32
  }
  func.func @transform_1(%arg0: i32) -> (i32, i32) {
    %c0_i32 = arith.constant 0 : i32
    %c0_i32_0 = arith.constant 0 : i32
    return %arg0, %c0_i32 : i32, i32
  }
  func.func @transform_2(%arg0: i32) -> (i32, i32) {
    %c0_i32 = arith.constant 0 : i32
    %c0_i32_0 = arith.constant 0 : i32
    return %arg0, %c0_i32 : i32, i32
  }
}

</mosaic_0001>

<llo_original>
// kernel: ibn_forward.3
$region0: #{ibn_forward.3}
  #allocation0 [shape = 'u32[]', space=smem, size = 0x4, offset = 0x4, fixed_abs, tag = 'smem constant byte address 0x4 - core index']
  #allocation1 [shape = 'u32[72,128]{1,0:T(1,128)}', space=vmem, size = 0x9000, scoped, tag = 'internal scratch']
  %s0 = inlined_call_operand.vmem [shape: f32[8,256], index: 0, kind: input, shape index: {}]
  %s1 = inlined_call_operand.vmem [shape: f32[8,2], index: 1, kind: input, shape index: {}]
  %s2 = inlined_call_operand.vmem [shape: f32[8,256], index: 2, kind: output, shape index: {}]
  %s3 = sld [smem:[#allocation0]]
  $region18: #{ibn_forward.3} parent=0
    _
  %s5 = ssub.s32 1, %s3
  %s6 = scalar_select 0, %s5, %s3
  // Predicated region
  $region2: #{ibn_forward.3} parent=0 // pred_check
    _
  $region3: #{ibn_forward.3} parent=0 // pred_check_branch
    %8 = sbr.rel (0) target = $region5
  $region4: #{ibn_forward.3} parent=0 // pred_region
    _
  $region5: #{ibn_forward.3} parent=0 // pred_fallthru
    _
  // Predicated region
  $region6: #{ibn_forward.3} parent=0 // pred_check
    _
  $region7: #{ibn_forward.3} parent=0 // pred_check_branch
    %10 = sbr.rel (0) target = $region9
  $region8: #{ibn_forward.3} parent=0 // pred_region
    _
  $region9: #{ibn_forward.3} parent=0 // pred_fallthru
    _
  %v11 = vld [vmem:[%s1] sm:$0xff]
  %v12 = vld [vmem:[%s0] sm:$0xff]
  %v13 = vld [vmem:[%s0 + $0x8] sm:$0xff]
  %15 = vset.pattern.permute.xlu0 0
  %16 = vperm.xlu0 %15, %v11
  %v17 = vpop.permute.xlu0 %16
  %v19 = vmul.f32 %v12, %v17
  %v20 = vmul.f32 %v13, %v17
  %21 = vset.pattern.permute.xlu0 1
  %22 = vperm.xlu0 %21, %v11
  %v23 = vpop.permute.xlu0 %22
  %v25 = vadd.f32 %v19, %v23
  %v26 = vadd.f32 %v20, %v23
  %27 = vst [vmem:[%s2] sm:$0xff] %v25
  %28 = vst [vmem:[%s2 + $0x8] sm:$0xff] %v26
  // Predicated region
  $region10: #{ibn_forward.3} parent=0 // pred_check
    _
  $region11: #{ibn_forward.3} parent=0 // pred_check_branch
    %30 = sbr.rel (0) target = $region13
  $region12: #{ibn_forward.3} parent=0 // pred_region
    _
  $region13: #{ibn_forward.3} parent=0 // pred_fallthru
    _
  // Predicated region
  $region14: #{ibn_forward.3} parent=0 // pred_check
    _
  $region15: #{ibn_forward.3} parent=0 // pred_check_branch
    %32 = sbr.rel (0) target = $region17
  $region16: #{ibn_forward.3} parent=0 // pred_region
    _
  $region17: #{ibn_forward.3} parent=0 // pred_fallthru
    _

// kernel: ibn_forward.2
$region0: #{ibn_forward.2}
  #allocation0 [shape = 'u32[]', space=smem, size = 0x4, offset = 0x4, fixed_abs, tag = 'smem constant byte address 0x4 - core index']
  #allocation1 [shape = 'u32[72,128]{1,0:T(1,128)}', space=vmem, size = 0x9000, scoped, tag = 'internal scratch']
  %s0 = inlined_call_operand.vmem [shape: f32[8,256], index: 0, kind: input, shape index: {}]
  %s1 = inlined_call_operand.vmem [shape: f32[8,1], index: 1, kind: output, shape index: {0}]
  %s2 = inlined_call_operand.vmem [shape: f32[8,1], index: 2, kind: output, shape index: {1}]
  %3 = xla_tuple %s1, %s2
  %s4 = sld [smem:[#allocation0]]
  $region22: #{ibn_forward.2} parent=0
    _
  %s6 = ssub.s32 1, %s4
  %s7 = scalar_select 0, %s6, %s4
  // Predicated region
  $region2: #{ibn_forward.2} parent=0 // pred_check
    _
  $region3: #{ibn_forward.2} parent=0 // pred_check_branch
    %9 = sbr.rel (0) target = $region5
  $region4: #{ibn_forward.2} parent=0 // pred_region
    _
  $region5: #{ibn_forward.2} parent=0 // pred_fallthru
    _
  %v10 = vld [vmem:[%s0] sm:$0xff]
  %v11 = vld [vmem:[%s0 + $0x8] sm:$0xff]
  %v12 = vadd.f32 %v10, %v11
  %13 = vadd.xlane.f32.xlu0 %v12
  %v14 = vpop.xlane.xlu0 %13
  %vm15 = vcmask 7168
  %16 = vst.msk [vmem:[%s1] sm:$0xff] %vm15, %v14
  %v17 = vmul.f32 %v10, %v10
  %v18 = vmul.f32 %v11, %v11
  %v19 = vadd.f32 %v17, %v18
  %20 = vadd.xlane.f32.xlu0 %v19
  %v21 = vpop.xlane.xlu0 %20
  %22 = vst.msk [vmem:[%s2] sm:$0xff] %vm15, %v21
  // Predicated region
  $region6: #{ibn_forward.2} parent=0 // pred_check
    _
  $region7: #{ibn_forward.2} parent=0 // pred_check_branch
    %24 = sbr.rel (0) target = $region9
  $region8: #{ibn_forward.2} parent=0 // pred_region
    _
  $region9: #{ibn_forward.2} parent=0 // pred_fallthru
    _
  // Predicated region
  $region10: #{ibn_forward.2} parent=0 // pred_check
    _
  $region11: #{ibn_forward.2} parent=0 // pred_check_branch
    %26 = sbr.rel (0) target = $region13
  $region12: #{ibn_forward.2} parent=0 // pred_region
    _
  $region13: #{ibn_forward.2} parent=0 // pred_fallthru
    _
  // Predicated region
  $region14: #{ibn_forward.2} parent=0 // pred_check
    _
  $region15: #{ibn_forward.2} parent=0 // pred_check_branch
    %28 = sbr.rel (0) target = $region17
  $region16: #{ibn_forward.2} parent=0 // pred_region
    _
  $region17: #{ibn_forward.2} parent=0 // pred_fallthru
    _
  // Predicated region
  $region18: #{ibn_forward.2} parent=0 // pred_check
    _
  $region19: #{ibn_forward.2} parent=0 // pred_check_branch
    %30 = sbr.rel (0) target = $region21
  $region20: #{ibn_forward.2} parent=0 // pred_region
    _
  $region21: #{ibn_forward.2} parent=0 // pred_fallthru
    _

</llo_original>
